<compile_context>
chip_gen: v5e
topology: v5e:2x2
jax: 0.10.0
libtpu: 0.0.40
codegen_flags: <defaults>
</compile_context>

<pallas_src>
import functools

import jax
import jax.numpy as jnp
from jax import lax
from jax.experimental import pallas as pl
from jax.experimental.pallas import tpu as pltpu


_LANE = 128
_VMEM_TILE_BUDGET = 24 * 1024 * 1024   # conservative across v5e/v6e/v7x
_VMEM_LIMIT_BYTES = 32 * 1024 * 1024


def _round_up(x: int, m: int) -> int:
    return (x + m - 1) // m * m


def _nk_plan(d_in: int, f: int):
    """Choose (TN, TK) and padded (K_pad, F_pad) from the weight dims only."""
    # K: keep the whole reduction dim in one block when it is small enough —
    # a single K step means no accumulator round trips and the weight panel is
    # fetched exactly once per (m, n) tile.
    if d_in <= 2048:
        tk, k_pad = d_in, d_in
    else:
        tk = 512
        k_pad = _round_up(d_in, tk)
    # N: full freq_dim per block when the (double-buffered) bf16 weight panel
    # fits comfortably in the VMEM budget -> x is streamed from HBM once and
    # the weight block index is constant (DMA'd once).
    if 2 * (k_pad * f * 2) <= _VMEM_TILE_BUDGET // 2:
        tn, f_pad = f, f
    else:
        tn = 512
        f_pad = _round_up(f, tn)
    return tn, tk, k_pad, f_pad


def _m_plan(m: int, tn: int, tk: int, num_n: int):
    """Pick TM from the remaining VMEM budget (multiple of 16, <= 512)."""
    weight_bytes = 2 * (tk * tn * 2)                     # 2 bufs, bf16 panel
    per_row = 2 * (tk * 4 + tn * 4 + _LANE * 4)          # f32 x + f32 out + mask
    tm_cap = max(16, (_VMEM_TILE_BUDGET - weight_bytes) // per_row)
    tm = int(min(512, tm_cap, _round_up(m, 16)))
    tm = max(16, (tm // 16) * 16)
    # v7x has 2 TensorCores per chip: keep >= 2 "parallel" grid points when the
    # whole problem would otherwise collapse onto a single grid point.
    if num_n == 1 and tm >= m and m > 16:
        tm = max(16, _round_up((m + 1) // 2, 16))
    m_pad = _round_up(m, tm)
    return tm, m_pad


def prepare_head_params(weight, bias):
    """One-time parameter prep: pad to the kernel's tiling and cast weight to
    bf16 (f32 MXU accumulation) and bias to an f32 row.  Do this at setup, not
    per forward call."""
    d_in, f = weight.shape
    _, _, k_pad, f_pad = _nk_plan(d_in, f)
    w_p = weight
    if (k_pad, f_pad) != (d_in, f):
        w_p = jnp.pad(weight, ((0, k_pad - d_in), (0, f_pad - f)))
    w_p = w_p.astype(jnp.bfloat16)
    b_p = jnp.pad(bias, (0, f_pad - f)).astype(jnp.float32).reshape(1, f_pad)
    return w_p, b_p


def _head_kernel(tile_valid_ref, fetch_idx_ref, mask_ref, x_ref, w_ref, b_ref,
                 o_ref):
    """Grid = (M tiles, N tiles, K tiles); K innermost / "arbitrary".

    tile_valid_ref : SMEM (num_m,) int32   scalar-prefetched per-M-tile flag
    fetch_idx_ref  : SMEM (num_m,) int32   (index_map only) DMA-elision map
    mask_ref       : VMEM (TM, 1)  int32   per-row validity column
    x_ref          : VMEM (TM, TK) f32     cast to bf16 in-kernel
    w_ref          : VMEM (TK, TN) bf16
    b_ref          : VMEM (1,  TN) f32
    o_ref          : VMEM (TM, TN) f32     accumulated in place (no scratch)
    """
    del fetch_idx_ref
    i = pl.program_id(0)
    k = pl.program_id(2)
    nk = pl.num_programs(2)
    tile_valid = tile_valid_ref[i] > 0
    is_first = k == 0
    is_last = k == nk - 1

    # Fully time-masked (or pure-padding) M tile: emit zeros, skip the MXU.
    # Its x/mask DMAs were already elided via fetch_idx in the index_maps.
    @pl.when(is_first & jnp.logical_not(tile_valid))
    def _zero_masked_tile():
        o_ref[...] = jnp.zeros_like(o_ref)

    # In-kernel bf16 cast (VPU pack, hides under the MXU); f32 accumulation
    # happens directly in the resident output block.
    @pl.when(tile_valid & is_first)
    def _first_k_step():
        o_ref[...] = jnp.dot(x_ref[...].astype(jnp.bfloat16), w_ref[...],
                             preferred_element_type=jnp.float32)

    @pl.when(tile_valid & jnp.logical_not(is_first))
    def _accumulate():
        o_ref[...] += jnp.dot(x_ref[...].astype(jnp.bfloat16), w_ref[...],
                              preferred_element_type=jnp.float32)

    # Bias + per-row time mask applied once, at the last K step.
    @pl.when(tile_valid & is_last)
    def _finalize():
        o_ref[...] = jnp.where(mask_ref[...] != 0,
                               o_ref[...] + b_ref[...], 0.0)


@functools.partial(jax.jit, static_argnames=("freq_dim",))
def autoregressive_head_forward(x, time_len, w_prepped, b_prepped, *, freq_dim):
    """x: (B, T, D_in) f32, time_len: (B,) int32,
    w_prepped: (K_pad, F_pad) bf16, b_prepped: (1, F_pad) f32
    -> (B, T, freq_dim) f32."""
    B, T, D_in = x.shape
    F = freq_dim
    M = B * T

    TN, TK, K_pad, F_pad = _nk_plan(D_in, F)
    assert w_prepped.shape == (K_pad, F_pad), "params not from prepare_head_params"
    assert b_prepped.shape == (1, F_pad)
    num_n, num_k = F_pad // TN, K_pad // TK

    TM, M_pad = _m_plan(M, TN, TK, num_n)
    num_m = M_pad // TM

    # x stays f32 — the bf16 cast happens on the tile inside the kernel, so
    # there is no standalone pad+cast pass over x in HBM.
    x2 = x.reshape(M, D_in)
    if M_pad != M or K_pad != D_in:
        x2 = jnp.pad(x2, ((0, M_pad - M), (0, K_pad - D_in)))

    # Per-row validity column (padded rows invalid), per-M-tile skip flags and
    # the DMA-elision fetch map (masked tiles point at the last valid tile, so
    # their x/mask block indices repeat and Pallas skips the copies).
    row_valid = (jnp.arange(T)[None, :] < time_len[:, None]).reshape(M)
    row_valid = jnp.pad(row_valid, (0, M_pad - M))
    mask_col = row_valid.astype(jnp.int32).reshape(M_pad, 1)
    tile_valid_b = row_valid.reshape(num_m, TM).any(axis=1)
    tile_idx = jnp.arange(num_m, dtype=jnp.int32)
    fetch_idx = jnp.maximum(
        lax.cummax(jnp.where(tile_valid_b, tile_idx, -1), axis=0), 0
    ).astype(jnp.int32)
    tile_valid = tile_valid_b.astype(jnp.int32)

    grid_spec = pltpu.PrefetchScalarGridSpec(
        num_scalar_prefetch=2,
        grid=(num_m, num_n, num_k),
        in_specs=[
            pl.BlockSpec((TM, 1), lambda i, j, k, tv, fi: (fi[i], 0)),   # mask
            pl.BlockSpec((TM, TK), lambda i, j, k, tv, fi: (fi[i], k)),  # x
            pl.BlockSpec((TK, TN), lambda i, j, k, tv, fi: (k, j)),      # weight
            pl.BlockSpec((1, TN), lambda i, j, k, tv, fi: (0, j)),       # bias
        ],
        out_specs=pl.BlockSpec((TM, TN), lambda i, j, k, tv, fi: (i, j)),
    )

    out_padded = pl.pallas_call(
        _head_kernel,
        out_shape=jax.ShapeDtypeStruct((M_pad, F_pad), jnp.float32),
        grid_spec=grid_spec,
        compiler_params=pltpu.CompilerParams(
            dimension_semantics=("parallel", "parallel", "arbitrary"),
            vmem_limit_bytes=_VMEM_LIMIT_BYTES),
    )(tile_valid, fetch_idx, mask_col, x2, w_prepped, b_prepped)

    out = out_padded
    if M_pad != M or F_pad != F:
        out = out[:M, :F]
    return out.reshape(B, T, F)


def _reference(x, time_len, weight, bias):
    y = jnp.einsum("btd,df->btf", x, weight) + bias[None, None, :]
    T = x.shape[1]
    mask = (jnp.arange(T)[None, :] < time_len[:, None])[..., None]
    return jnp.where(mask, y, 0.0)


if __name__ == "__main__":
    # Small shapes: batch=2, seq=8, input_dim=32, freq_dim=16.
    B, T, D_in, F = 2, 8, 32, 16

    key = jax.random.PRNGKey(0)
    kx, kw, kb = jax.random.split(key, 3)

    x = jax.random.normal(kx, (B, T, D_in), dtype=jnp.float32)
    time_len = jnp.array([T, T // 2], dtype=jnp.int32)

    # Deterministic parameter init (synthetic; no checkpoint load).
    weight = jax.random.normal(kw, (D_in, F), dtype=jnp.float32) * 0.05
    bias = jax.random.normal(kb, (F,), dtype=jnp.float32) * 0.01

    # One-time parameter prep (pad + bf16 cast) — setup path, not per call.
    w_p, b_p = prepare_head_params(weight, bias)

    out = autoregressive_head_forward(x, time_len, w_p, b_p, freq_dim=F)
    out = jax.block_until_ready(out)

    ref = _reference(x, time_len, weight, bias)
    assert out.shape == (B, T, F)
    # bf16 matmul operands (f32 accumulate) => looser tolerance vs f32 ref.
    assert jnp.allclose(out, ref, atol=1e-2, rtol=1e-2), float(
        jnp.max(jnp.abs(out - ref)))

    print("KERNEL_OK")
</pallas_src>

<mosaic_0001>
module attributes {stable_mosaic.version = 11 : i64} {
  func.func @_head_kernel(%arg0: i32, %arg1: i32, %arg2: i32, %arg3: memref<1xi32, #tpu.memory_space<smem>>, %arg4: memref<1xi32, #tpu.memory_space<smem>>, %arg5: memref<16x1xi32, #tpu.memory_space<vmem>>, %arg6: memref<16x32xf32, #tpu.memory_space<vmem>>, %arg7: memref<32x16xbf16, #tpu.memory_space<vmem>>, %arg8: memref<1x16xf32, #tpu.memory_space<vmem>>, %arg9: memref<16x16xf32, #tpu.memory_space<vmem>>) attributes {dimension_semantics = [#tpu.dimension_semantics<parallel>, #tpu.dimension_semantics<parallel>, #tpu.dimension_semantics<arbitrary>], iteration_bounds = array<i64: 1, 1, 1>, scalar_prefetch = 2 : i64, scratch_operands = 0 : i64, tpu.core_type = #tpu.core_type<tc>, window_params = [{transform_indices = @transform_0, window_bounds = array<i64: 16, 1>}, {transform_indices = @transform_1, window_bounds = array<i64: 16, 32>}, {transform_indices = @transform_2, window_bounds = array<i64: 32, 16>}, {transform_indices = @transform_3, window_bounds = array<i64: 1, 16>}, {transform_indices = @transform_4, window_bounds = array<i64: 16, 16>}]} {
    %0 = arith.index_cast %arg0 : i32 to index
    %1 = memref.load %arg3[%0] : memref<1xi32, #tpu.memory_space<smem>>
    %c0_i32 = arith.constant 0 : i32
    %2 = arith.cmpi sgt, %1, %c0_i32 : i32
    %c0_i32_0 = arith.constant 0 : i32
    %3 = arith.cmpi eq, %arg2, %c0_i32_0 : i32
    %c0_i32_1 = arith.constant 0 : i32
    %4 = arith.cmpi eq, %arg2, %c0_i32_1 : i32
    %true = arith.constant true
    %5 = arith.xori %2, %true : i1
    %6 = arith.andi %3, %5 : i1
    %7 = arith.extui %6 : i1 to i32
    %c0_i32_2 = arith.constant 0 : i32
    %8 = arith.cmpi ne, %7, %c0_i32_2 : i32
    scf.if %8 {
      %cst = arith.constant 0.000000e+00 : f32
      %19 = vector.broadcast %cst : f32 to vector<16x16xf32>
      %c0 = arith.constant 0 : index
      %c0_7 = arith.constant 0 : index
      %20 = vector.load %arg9[%c0, %c0_7] : memref<16x16xf32, #tpu.memory_space<vmem>>, vector<16x16xf32>
      tpu.vector_store %arg9[%c0, %c0_7], %19 {strides = array<i32>} : memref<16x16xf32, #tpu.memory_space<vmem>>, vector<16x16xf32>,
    } else {
    }
    %9 = arith.andi %2, %3 : i1
    %10 = arith.extui %9 : i1 to i32
    %c0_i32_3 = arith.constant 0 : i32
    %11 = arith.cmpi ne, %10, %c0_i32_3 : i32
    scf.if %11 {
      %c0 = arith.constant 0 : index
      %c0_7 = arith.constant 0 : index
      %19 = vector.load %arg6[%c0, %c0_7] : memref<16x32xf32, #tpu.memory_space<vmem>>, vector<16x32xf32>
      %20 = arith.truncf %19 : vector<16x32xf32> to vector<16x32xbf16>
      %c0_8 = arith.constant 0 : index
      %c0_9 = arith.constant 0 : index
      %21 = vector.load %arg7[%c0_8, %c0_9] : memref<32x16xbf16, #tpu.memory_space<vmem>>, vector<32x16xbf16>
      %cst = arith.constant dense<0.000000e+00> : vector<16x16xf32>
      %22 = tpu.matmul %20, %21, %cst {dimension_numbers = #tpu.dot_dimension_numbers<[1], [0], [0], [1], [0, 0, 1, 1], [], []>} : vector<16x32xbf16>, vector<32x16xbf16>, vector<16x16xf32> -> vector<16x16xf32>
      %c0_10 = arith.constant 0 : index
      %c0_11 = arith.constant 0 : index
      %23 = vector.load %arg9[%c0_10, %c0_11] : memref<16x16xf32, #tpu.memory_space<vmem>>, vector<16x16xf32>
      tpu.vector_store %arg9[%c0_10, %c0_11], %22 {strides = array<i32>} : memref<16x16xf32, #tpu.memory_space<vmem>>, vector<16x16xf32>,
    } else {
    }
    %true_4 = arith.constant true
    %12 = arith.xori %3, %true_4 : i1
    %13 = arith.andi %2, %12 : i1
    %14 = arith.extui %13 : i1 to i32
    %c0_i32_5 = arith.constant 0 : i32
    %15 = arith.cmpi ne, %14, %c0_i32_5 : i32
    scf.if %15 {
      %c0 = arith.constant 0 : index
      %c0_7 = arith.constant 0 : index
      %19 = vector.load %arg9[%c0, %c0_7] : memref<16x16xf32, #tpu.memory_space<vmem>>, vector<16x16xf32>
      %c0_8 = arith.constant 0 : index
      %c0_9 = arith.constant 0 : index
      %20 = vector.load %arg6[%c0_8, %c0_9] : memref<16x32xf32, #tpu.memory_space<vmem>>, vector<16x32xf32>
      %21 = arith.truncf %20 : vector<16x32xf32> to vector<16x32xbf16>
      %c0_10 = arith.constant 0 : index
      %c0_11 = arith.constant 0 : index
      %22 = vector.load %arg7[%c0_10, %c0_11] : memref<32x16xbf16, #tpu.memory_space<vmem>>, vector<32x16xbf16>
      %cst = arith.constant dense<0.000000e+00> : vector<16x16xf32>
      %23 = tpu.matmul %21, %22, %cst {dimension_numbers = #tpu.dot_dimension_numbers<[1], [0], [0], [1], [0, 0, 1, 1], [], []>} : vector<16x32xbf16>, vector<32x16xbf16>, vector<16x16xf32> -> vector<16x16xf32>
      %24 = arith.addf %19, %23 : vector<16x16xf32>
      %c0_12 = arith.constant 0 : index
      %c0_13 = arith.constant 0 : index
      %25 = vector.load %arg9[%c0_12, %c0_13] : memref<16x16xf32, #tpu.memory_space<vmem>>, vector<16x16xf32>
      tpu.vector_store %arg9[%c0_12, %c0_13], %24 {strides = array<i32>} : memref<16x16xf32, #tpu.memory_space<vmem>>, vector<16x16xf32>,
    } else {
    }
    %16 = arith.andi %2, %4 : i1
    %17 = arith.extui %16 : i1 to i32
    %c0_i32_6 = arith.constant 0 : i32
    %18 = arith.cmpi ne, %17, %c0_i32_6 : i32
    scf.if %18 {
      %c0 = arith.constant 0 : index
      %c0_7 = arith.constant 0 : index
      %19 = vector.load %arg5[%c0, %c0_7] : memref<16x1xi32, #tpu.memory_space<vmem>>, vector<16x1xi32>
      %c0_i32_8 = arith.constant 0 : i32
      %20 = vector.broadcast %c0_i32_8 : i32 to vector<16x1xi32>
      %21 = arith.cmpi ne, %19, %20 : vector<16x1xi32>
      %c0_9 = arith.constant 0 : index
      %c0_10 = arith.constant 0 : index
      %22 = vector.load %arg9[%c0_9, %c0_10] : memref<16x16xf32, #tpu.memory_space<vmem>>, vector<16x16xf32>
      %c0_11 = arith.constant 0 : index
      %c0_12 = arith.constant 0 : index
      %23 = vector.load %arg8[%c0_11, %c0_12] : memref<1x16xf32, #tpu.memory_space<vmem>>, vector<1x16xf32>
      %24 = vector.broadcast %23 : vector<1x16xf32> to vector<16x16xf32>
      %25 = arith.addf %22, %24 : vector<16x16xf32>
      %cst = arith.constant 0.000000e+00 : f32
      %26 = vector.shape_cast %21 : vector<16x1xi1> to vector<16x1xi1>
      %27 = vector.broadcast %26 : vector<16x1xi1> to vector<16x16xi1>
      %28 = vector.broadcast %cst : f32 to vector<16x16xf32>
      %29 = arith.select %27, %25, %28 : vector<16x16xi1>, vector<16x16xf32>
      %c0_13 = arith.constant 0 : index
      %c0_14 = arith.constant 0 : index
      %30 = vector.load %arg9[%c0_13, %c0_14] : memref<16x16xf32, #tpu.memory_space<vmem>>, vector<16x16xf32>
      tpu.vector_store %arg9[%c0_13, %c0_14], %29 {strides = array<i32>} : memref<16x16xf32, #tpu.memory_space<vmem>>, vector<16x16xf32>,
    } else {
    }
    return
  }
  func.func @transform_0(%arg0: i32, %arg1: i32, %arg2: i32, %arg3: memref<1xi32, #tpu.memory_space<smem>>, %arg4: memref<1xi32, #tpu.memory_space<smem>>) -> (i32, i32) {
    %0 = arith.index_cast %arg0 : i32 to index
    %1 = memref.load %arg4[%0] : memref<1xi32, #tpu.memory_space<smem>>
    %c0_i32 = arith.constant 0 : i32
    %c0_i32_0 = arith.constant 0 : i32
    return %1, %c0_i32 : i32, i32
  }
  func.func @transform_1(%arg0: i32, %arg1: i32, %arg2: i32, %arg3: memref<1xi32, #tpu.memory_space<smem>>, %arg4: memref<1xi32, #tpu.memory_space<smem>>) -> (i32, i32) {
    %0 = arith.index_cast %arg0 : i32 to index
    %1 = memref.load %arg4[%0] : memref<1xi32, #tpu.memory_space<smem>>
    %c0_i32 = arith.constant 0 : i32
    return %1, %arg2 : i32, i32
  }
  func.func @transform_2(%arg0: i32, %arg1: i32, %arg2: i32, %arg3: memref<1xi32, #tpu.memory_space<smem>>, %arg4: memref<1xi32, #tpu.memory_space<smem>>) -> (i32, i32) {
    %c0_i32 = arith.constant 0 : i32
    return %arg2, %arg1 : i32, i32
  }
  func.func @transform_3(%arg0: i32, %arg1: i32, %arg2: i32, %arg3: memref<1xi32, #tpu.memory_space<smem>>, %arg4: memref<1xi32, #tpu.memory_space<smem>>) -> (i32, i32) {
    %c0_i32 = arith.constant 0 : i32
    %c0_i32_0 = arith.constant 0 : i32
    return %c0_i32, %arg1 : i32, i32
  }
  func.func @transform_4(%arg0: i32, %arg1: i32, %arg2: i32, %arg3: memref<1xi32, #tpu.memory_space<smem>>, %arg4: memref<1xi32, #tpu.memory_space<smem>>) -> (i32, i32) {
    %c0_i32 = arith.constant 0 : i32
    return %arg0, %arg1 : i32, i32
  }
}

</mosaic_0001>

<llo_original>
// kernel: autoregressive_head_forward.1
$region0: #{autoregressive_head_forward.1}
  #allocation0 [shape = 'u32[]', space=smem, size = 0x4, offset = 0x4, fixed_abs, tag = 'smem constant byte address 0x4 - core index']
  #allocation1 [shape = 'u32[72,128]{1,0:T(1,128)}', space=vmem, size = 0x9000, scoped, tag = 'internal scratch']
  #allocation2 [shape = 's32[1]{0}', space=sflag, size = 0x4, scoped, tag = 'scoped memory for autoregressive_head_forward.1']
  #allocation3 [shape = 's32[1]{0:T(128)S(6)}', space=smem, size = 0x200, scoped, tag = 'prefetched SMEM operand 0']
  #allocation4 [shape = 's32[1]{0:T(128)S(6)}', space=smem, size = 0x200, scoped, tag = 'prefetched SMEM operand 1']
  %s0 = inlined_call_operand.<no memory space> [shape: s32[1], index: 0, kind: input, shape index: {}]
  %s1 = inlined_call_operand.<no memory space> [shape: s32[1], index: 1, kind: input, shape index: {}]
  %s2 = inlined_call_operand.vmem [shape: s32[16,1], index: 2, kind: input, shape index: {}]
  %s3 = inlined_call_operand.vmem [shape: f32[16,32], index: 3, kind: input, shape index: {}]
  %s4 = inlined_call_operand.vmem [shape: bf16[32,16], index: 4, kind: input, shape index: {}]
  %s5 = inlined_call_operand.vmem [shape: f32[1,16], index: 5, kind: input, shape index: {}]
  %s6 = inlined_call_operand.hbm [shape: f32[16,16], index: 6, kind: output, shape index: {}]
  %s7 = sld [smem:[#allocation0]]
  $region42: #{autoregressive_head_forward.1} parent=0
    _
  %s9 = ssub.s32 1, %s7
  %s10 = scalar_select 0, %s9, %s7
  %11 = sst [smem:[#allocation3]] %s0
  %12 = sst [smem:[#allocation4]] %s1
  $region1: #{autoregressive_head_forward.1} parent=0
    #allocation5 [shape = 'u8[8192]{0}', space=vmem, size = 0x2000, scoped, tag = 'output window, operand 0, single buffered']
    #allocation6 [shape = 's32[1]{0}', space=sflag, size = 0x4, scoped, tag = 'scoped memory for autoregressive_head_forward.1']
    %13 = vsyncpa [#allocation6], 0
    // Predicated region
    $region2: #{autoregressive_head_forward.1} parent=1 // pred_check
      _
    $region3: #{autoregressive_head_forward.1} parent=1 // pred_check_branch
      %15 = sbr.rel (0) target = $region5
    $region4: #{autoregressive_head_forward.1} parent=1 // pred_region
      %s16 = sld [smem:[#allocation4]]
      %s17 = smul.u32 2, %s16
      %p18 = scmp.lt.s32.totalorder %s17, 1
      %s19 = scalar_select %p18, %s17, 1
      %s20 = smul.addr %s19, 8
      %s21 = scalar_lea.vmem %s2, %s20
      %s22 = sld [smem:[#allocation4]]
      %s23 = smul.u32 2, %s22
    $region5: #{autoregressive_head_forward.1} parent=1 // pred_fallthru
      _
    // Predicated region
    $region6: #{autoregressive_head_forward.1} parent=1 // pred_check
      _
    $region7: #{autoregressive_head_forward.1} parent=1 // pred_check_branch
      %25 = sbr.rel (0) target = $region9
    $region8: #{autoregressive_head_forward.1} parent=1 // pred_region
      %s26 = sld [smem:[#allocation4]]
      %s27 = smul.u32 2, %s26
      %p28 = scmp.lt.s32.totalorder %s27, 1
      %s29 = scalar_select %p28, %s27, 1
      %s30 = smul.addr %s29, 8
      %s31 = scalar_lea.vmem %s3, %s30
      %s32 = sld [smem:[#allocation4]]
      %s33 = smul.u32 2, %s32
    $region9: #{autoregressive_head_forward.1} parent=1 // pred_fallthru
      _
    // Predicated region
    $region10: #{autoregressive_head_forward.1} parent=1 // pred_check
      _
    $region11: #{autoregressive_head_forward.1} parent=1 // pred_check_branch
      %35 = sbr.rel (0) target = $region13
    $region12: #{autoregressive_head_forward.1} parent=1 // pred_region
      _
    $region13: #{autoregressive_head_forward.1} parent=1 // pred_fallthru
      _
    // Predicated region
    $region14: #{autoregressive_head_forward.1} parent=1 // pred_check
      _
    $region15: #{autoregressive_head_forward.1} parent=1 // pred_check_branch
      %37 = sbr.rel (0) target = $region17
    $region16: #{autoregressive_head_forward.1} parent=1 // pred_region
      _
    $region17: #{autoregressive_head_forward.1} parent=1 // pred_fallthru
      _
    %s38 = sld [smem:[#allocation4]]
    %s39 = smul.u32 2, %s38
    %p40 = scmp.lt.s32.totalorder %s39, 1
    %s41 = scalar_select %p40, %s39, 1
    %s42 = smul.addr %s41, 8
    %s43 = scalar_lea.vmem %s2, %s42
    %s44 = sld [smem:[#allocation4]]
    %s45 = smul.u32 2, %s44
    %p46 = scmp.lt.s32.totalorder %s45, 1
    %s47 = scalar_select %p46, %s45, 1
    %s48 = smul.addr %s47, 8
    %s49 = scalar_lea.vmem %s3, %s48
    %s50 = sld [smem:[#allocation4]]
    %s51 = smul.u32 2, %s50
    %p52 = scmp.lt.s32.totalorder %s51, 1
    %s53 = scalar_select %p52, %s51, 1
    %s54 = smul.addr %s53, 8
    %s55 = scalar_lea.vmem %s2, %s54
    %s56 = sld [smem:[#allocation4]]
    %s57 = smul.u32 2, %s56
    %s58 = sld [smem:[#allocation4]]
    %s59 = smul.u32 2, %s58
    %p60 = scmp.lt.s32.totalorder %s59, 1
    %s61 = scalar_select %p60, %s59, 1
    %s62 = smul.addr %s61, 8
    %s63 = scalar_lea.vmem %s3, %s62
    %s64 = sld [smem:[#allocation4]]
    %s65 = smul.u32 2, %s64
    %s67 = sld [smem:[#allocation3]]
    %p68 = scmp.gt.s32.totalorder %s67, 0
    %p69 = scmp.eq.s32.totalorder 0, 0
    %p70 = scmp.le.s32.totalorder %s67, 0
    %p71 = pnand %p69, %p70
    %p72 = pneg %p71
    // Predicated region
    $region18: #{autoregressive_head_forward.1} parent=1 // pred_check
      _
    $region19: #{autoregressive_head_forward.1} parent=1 // pred_check_branch
      %74 = sbr.rel (%p71) target = $region21
    $region20: #{autoregressive_head_forward.1} parent=1 // pred_region
      %vm75 = vcmask 130048
      %76 = vst.msk [vmem:[#allocation5] sm:$0xff] %vm75, 0.0
      %77 = vst.msk [vmem:[#allocation5 + $0x8] sm:$0xff] %vm75, 0.0
    $region21: #{autoregressive_head_forward.1} parent=1 // pred_fallthru
      _
    %p78 = pnand %p68, %p69
    %p79 = pneg %p78
    // Predicated region
    $region22: #{autoregressive_head_forward.1} parent=1 // pred_check
      _
    $region23: #{autoregressive_head_forward.1} parent=1 // pred_check_branch
      %81 = sbr.rel (%p78) target = $region25
    $region24: #{autoregressive_head_forward.1} parent=1 // pred_region
      %v82 = vld [vmem:[%s63] sm:$0xff]
      %v83 = vld [vmem:[%s63 + $0x8] sm:$0xff]
      %v84 = vpack.c.bf16 %v83, %v82
      %v85 = vld [vmem:[%s4] sm:$0xf]
      %v86 = vld [vmem:[%s4 + $0x4] sm:$0xf]
      %v87 = vld [vmem:[%s4 + $0x8] sm:$0xf]
      %v88 = vld [vmem:[%s4 + $0xc] sm:$0xf]
      %v93 = vunpack.c.l.b16 %v85
      %v94 = vunpack.c.l.b16 %v86
      %v95 = vunpack.c.l.b16 %v87
      %v96 = vunpack.c.l.b16 %v88
      %v97 = vpack.c.b16 %v94, %v93
      %v98 = vpack.c.b16 %v96, %v95
      %vm101 = vcmask 261120
      %v103 = vsel %vm101, %v84, 0
      %105 = vmatpush.bf16.msra.mxu0 0
      %106 = vmatpush.bf16.msra.mxu0 0
      %107 = vmatpush.bf16.msra.mxu0 0
      %108 = vmatpush.bf16.msra.mxu0 0
      %109 = vmatpush.bf16.msra.mxu0 0
      %110 = vmatpush.bf16.msra.mxu0 0
      %111 = vmatpush.bf16.msra.mxu0 %v98
      %112 = vmatpush.bf16.msra.mxu0 %v97
      %113 = vmatmul.bf16.gmra.mxu0 %v103
      %v114 = vpop.f32.mrf.mxu0
      %v115 = vadd.f32 0.0, %v114
      %v116 = vpop.f32.mrf.mxu0
      %v117 = vadd.f32 0.0, %v116
      %118 = vdwg.mxu0
      %vm119 = vcmask 130048
      %120 = vst.msk [vmem:[#allocation5] sm:$0xff] %vm119, %v115
      %121 = vst.msk [vmem:[#allocation5 + $0x8] sm:$0xff] %vm119, %v117
    $region25: #{autoregressive_head_forward.1} parent=1 // pred_fallthru
      _
    %p122 = scmp.ne.s32.totalorder 0, 0
    %p123 = pnand %p68, %p122
    %p124 = pneg %p123
    // Predicated region
    $region26: #{autoregressive_head_forward.1} parent=1 // pred_check
      _
    $region27: #{autoregressive_head_forward.1} parent=1 // pred_check_branch
      %126 = sbr.rel (%p123) target = $region29
    $region28: #{autoregressive_head_forward.1} parent=1 // pred_region
      %v127 = vld [vmem:[#allocation5] sm:$0xff]
      %v128 = vld [vmem:[#allocation5 + $0x8] sm:$0xff]
      %v129 = vld [vmem:[%s63] sm:$0xff]
      %v130 = vld [vmem:[%s63 + $0x8] sm:$0xff]
      %v131 = vpack.c.bf16 %v130, %v129
      %v132 = vld [vmem:[%s4] sm:$0xf]
      %v133 = vld [vmem:[%s4 + $0x4] sm:$0xf]
      %v134 = vld [vmem:[%s4 + $0x8] sm:$0xf]
      %v135 = vld [vmem:[%s4 + $0xc] sm:$0xf]
      %v140 = vunpack.c.l.b16 %v132
      %v141 = vunpack.c.l.b16 %v133
      %v142 = vunpack.c.l.b16 %v134
      %v143 = vunpack.c.l.b16 %v135
      %v144 = vpack.c.b16 %v141, %v140
      %v145 = vpack.c.b16 %v143, %v142
      %vm148 = vcmask 261120
      %v150 = vsel %vm148, %v131, 0
      %152 = vmatpush.bf16.msra.mxu0 0
      %153 = vmatpush.bf16.msra.mxu0 0
      %154 = vmatpush.bf16.msra.mxu0 0
      %155 = vmatpush.bf16.msra.mxu0 0
      %156 = vmatpush.bf16.msra.mxu0 0
      %157 = vmatpush.bf16.msra.mxu0 0
      %158 = vmatpush.bf16.msra.mxu0 %v145
      %159 = vmatpush.bf16.msra.mxu0 %v144
      %160 = vmatmul.bf16.gmra.mxu0 %v150
      %v161 = vpop.f32.mrf.mxu0
      %v162 = vadd.f32 0.0, %v161
      %v163 = vpop.f32.mrf.mxu0
      %v164 = vadd.f32 0.0, %v163
      %165 = vdwg.mxu0
      %v166 = vadd.f32 %v127, %v162
      %v167 = vadd.f32 %v128, %v164
      %vm168 = vcmask 130048
      %169 = vst.msk [vmem:[#allocation5] sm:$0xff] %vm168, %v166
      %170 = vst.msk [vmem:[#allocation5 + $0x8] sm:$0xff] %vm168, %v167
    $region29: #{autoregressive_head_forward.1} parent=1 // pred_fallthru
      _
    // Predicated region
    $region30: #{autoregressive_head_forward.1} parent=1 // pred_check
      _
    $region31: #{autoregressive_head_forward.1} parent=1 // pred_check_branch
      %172 = sbr.rel (%p78) target = $region33
    $region32: #{autoregressive_head_forward.1} parent=1 // pred_region
      %v173 = vld [vmem:[%s55] sm:$0xff]
      %v174 = vld [vmem:[%s55 + $0x8] sm:$0xff]
      %vm175 = vcmp.ne.s32.totalorder %v173, 0
      %vm176 = vcmp.ne.s32.totalorder %v174, 0
      %v177 = vld [vmem:[#allocation5] sm:$0xff]
      %v178 = vld [vmem:[#allocation5 + $0x8] sm:$0xff]
      %v179 = vld [vmem:[%s5] sm:$0x1]
      %v181 = vperm.slane %v179, 0
      %v183 = vadd.f32 %v177, %v181
      %v184 = vadd.f32 %v178, %v181
      %v185 = vsel %vm175, 1, 0
      %v186 = vsel %vm176, 1, 0
      %187 = vset.pattern.permute.xlu0 0
      %188 = vperm.xlu0 %187, %v185
      %v189 = vpop.permute.xlu0 %188
      %190 = vset.pattern.permute.xlu0 0
      %191 = vperm.xlu0 %190, %v186
      %v192 = vpop.permute.xlu0 %191
      %vm193 = vcmp.eq.s32.totalorder %v189, 1
      %vm194 = vcmp.eq.s32.totalorder %v192, 1
      %v195 = vsel %vm193, %v183, 0.0
      %v196 = vsel %vm194, %v184, 0.0
      %vm197 = vcmask 130048
      %198 = vst.msk [vmem:[#allocation5] sm:$0xff] %vm197, %v195
      %199 = vst.msk [vmem:[#allocation5 + $0x8] sm:$0xff] %vm197, %v196
    $region33: #{autoregressive_head_forward.1} parent=1 // pred_fallthru
      _
    // Predicated region
    $region34: #{autoregressive_head_forward.1} parent=1 // pred_check
      _
    $region35: #{autoregressive_head_forward.1} parent=1 // pred_check_branch
      %201 = sbr.rel (0) target = $region37
    $region36: #{autoregressive_head_forward.1} parent=1 // pred_region
      %203 = vsyncadd [#allocation6], 0
      %s204 = sshll.u32 [#allocation5], 4
      %s205 = int_to_ptr.vmem [resolvable:$true] %s204
      %s206 = sshll.u32 %s6, 4
      %s207 = int_to_ptr.hbm [resolvable:$true] %s206
      %212 = dma.vmem_to_hbm [thread:$0]  %s205, 256, %s207, [#allocation6], 128, 128, 8
    $region37: #{autoregressive_head_forward.1} parent=1 // pred_fallthru
      _
    // Predicated region
    $region38: #{autoregressive_head_forward.1} parent=1 // pred_check
      _
    $region39: #{autoregressive_head_forward.1} parent=1 // pred_check_branch
      %214 = sbr.rel (0) target = $region41
    $region40: #{autoregressive_head_forward.1} parent=1 // pred_region
      %216 = dma.done [#allocation6], 256
    $region41: #{autoregressive_head_forward.1} parent=1 // pred_fallthru
      _
    %217 = vsyncpa [#allocation6], 1

</llo_original>
